<compile_context>
chip_gen: v7x
topology: tpu7x:2x2x1
jax: 0.10.0
libtpu: 0.0.40
codegen_flags: <defaults>
</compile_context>

<pallas_src>
import functools

import jax
import jax.numpy as jnp
from jax.experimental import pallas as pl
from jax.experimental.pallas import tpu as pltpu

_LANE = 128


def _round_up(n, m):
    return (n + m - 1) // m * m


@functools.lru_cache(maxsize=1)
def _vmem_capacity_bytes():
    try:
        return int(pltpu.get_tpu_info().vmem_capacity_bytes)
    except Exception:
        return 64 << 20  # conservative fallback: v7x per-TensorCore VMEM


def _pick_tile(full, pref, align):
    """Largest multiple of `align` <= pref that divides `full` (full % align == 0)."""
    if full <= pref:
        return full
    t = max((pref // align) * align, align)
    while t > align and full % t:
        t -= align
    return t


# ----------------------------------------------------------------------------- kernels
def _linear_kernel(x_ref, w_ref, b_ref, o_ref):
    # Full-K tile: one MXU matmul with f32 accumulation, f32 bias add on the VPU.
    acc = jnp.dot(x_ref[...], w_ref[...], preferred_element_type=jnp.float32)
    o_ref[...] = (acc + b_ref[...]).astype(o_ref.dtype)


def _linear_kernel_splitk(x_ref, w_ref, b_ref, o_ref, acc_ref):
    # K split along the innermost ("arbitrary") grid axis; accumulate in f32 VMEM.
    k = pl.program_id(2)

    @pl.when(k == 0)
    def _():
        acc_ref[...] = jnp.zeros_like(acc_ref)

    acc_ref[...] += jnp.dot(x_ref[...], w_ref[...],
                            preferred_element_type=jnp.float32)

    @pl.when(k == pl.num_programs(2) - 1)
    def _():
        o_ref[...] = (acc_ref[...] + b_ref[...]).astype(o_ref.dtype)


# ----------------------------------------------------------------------------- wrapper
@functools.partial(
    jax.jit, static_argnames=("outf", "tm", "tn", "out_dtype", "max_k_tile"))
def random_matrix_layer(x, w_p, b_p, *, outf, tm=None, tn=None,
                        out_dtype=jnp.float32, max_k_tile=None):
    """y = x @ W + b with W/b pre-padded & pre-cast by prepare_kernel_params().

    w_p : (k_p, n_p) compute-dtype weight, K/N padded to multiples of 128.
    b_p : (1, n_p) float32 bias row.
    outf: true (unpadded) out_features; output is sliced back to (M, outf).
    out_dtype: f32 (matches torch Linear) or bf16 (halves writeback bytes);
               accumulation is always f32 on the MXU.
    max_k_tile: optional cap on the K tile (tuning / test knob for the split-K path).
    """
    M, inf = x.shape
    k_p, n_p = w_p.shape
    assert inf <= k_p, "x feature dim larger than the prepared weight's padded K"
    compute_dtype = w_p.dtype
    cb = jnp.dtype(compute_dtype).itemsize
    ob = jnp.dtype(out_dtype).itemsize

    cap = _vmem_capacity_bytes()
    budget = (cap * 3) // 4  # leave Mosaic internal-scratch / semaphore headroom
    if tm is None:
        tm = 512 if cap >= (96 << 20) else 256   # big tiles on v5e/v6e, 256 on v7x
    if tn is None:
        tn = 512 if cap >= (96 << 20) else 256

    # ---- tile selection ------------------------------------------------------
    pack = max(8, 32 // cb)                       # native sublane packing (bf16 -> 16)
    tm_eff = min(tm, _round_up(M, pack))          # never pad a tiny batch out to tm
    tn_eff = _pick_tile(n_p, tn, _LANE)           # lane-dense, divides n_p exactly

    def buf_bytes(tk, split):
        return (2 * tm_eff * tk * cb              # x tiles   (double buffered)
                + 2 * tk * tn_eff * cb            # W tiles   (double buffered)
                + 2 * tn_eff * 4                  # bias      (double buffered)
                + 2 * tm_eff * tn_eff * ob        # out tiles (double buffered)
                + (tm_eff * tn_eff * 4 if split else 0))   # f32 accumulator scratch

    # Split K only when the full-K, double-buffered slabs do not fit the budget
    # (e.g. v7x at large in_features) -> the weight never falls back to
    # single buffering, and DMA of the next slab always overlaps compute.
    tk_eff = k_p
    if buf_bytes(k_p, split=False) > budget:
        tk_eff = _pick_tile(k_p, 2048, _LANE)
        while tk_eff > _LANE and buf_bytes(tk_eff, split=True) > budget:
            tk_eff = _pick_tile(k_p, tk_eff // 2, _LANE)
    if max_k_tile is not None:
        tk_eff = min(tk_eff, _pick_tile(k_p, max_k_tile, _LANE))
    split_k = tk_eff < k_p

    m_p = _round_up(M, tm_eff)
    ni, nj, nk = m_p // tm_eff, n_p // tn_eff, k_p // tk_eff

    # ---- pad + cast x only (W/b were converted once at init) ------------------
    x_p = x
    if (m_p, k_p) != (M, inf):
        x_p = jnp.pad(x_p, ((0, m_p - M), (0, k_p - inf)))   # zero pad: exact for dot
    if x_p.dtype != compute_dtype:
        x_p = x_p.astype(compute_dtype)

    # ---- loop order: keep resident the operand whose re-reads cost more -------
    # weight-resident (j outer): x is streamed nj times from HBM;
    # x-resident (i outer): W is streamed ni times. Pick the cheaper one.
    weight_resident = (nj - 1) * m_p * k_p <= (ni - 1) * n_p * k_p
    if weight_resident:
        grid = (nj, ni, nk)
        x_map = lambda j, i, k: (i, k)
        w_map = lambda j, i, k: (k, j)
        b_map = lambda j, i, k: (0, j)
        o_map = lambda j, i, k: (i, j)
    else:
        grid = (ni, nj, nk)
        x_map = lambda i, j, k: (i, k)
        w_map = lambda i, j, k: (k, j)
        b_map = lambda i, j, k: (0, j)
        o_map = lambda i, j, k: (i, j)

    kernel = _linear_kernel_splitk if split_k else _linear_kernel
    scratch = [pltpu.VMEM((tm_eff, tn_eff), jnp.float32)] if split_k else []

    vmem_limit = int(min(cap * 4 // 5,
                         max(buf_bytes(tk_eff, split_k) + (8 << 20), 16 << 20)))

    out_p = pl.pallas_call(
        kernel,
        out_shape=jax.ShapeDtypeStruct((m_p, n_p), out_dtype),
        grid_spec=pltpu.PrefetchScalarGridSpec(
            num_scalar_prefetch=0,
            grid=grid,
            in_specs=[
                pl.BlockSpec((tm_eff, tk_eff), x_map),   # x tile
                pl.BlockSpec((tk_eff, tn_eff), w_map),   # weight tile (default double buffer)
                pl.BlockSpec((1, tn_eff), b_map),        # f32 bias tile
            ],
            out_specs=pl.BlockSpec((tm_eff, tn_eff), o_map),
            scratch_shapes=scratch,
        ),
        compiler_params=pltpu.CompilerParams(
            # No reduction across the two spatial axes -> both megacore-shardable;
            # K (if split) carries the accumulator and stays "arbitrary".
            dimension_semantics=("parallel", "parallel", "arbitrary"),
            vmem_limit_bytes=vmem_limit,
        ),
    )(x_p, w_p, b_p)

    if (m_p, n_p) != (M, outf):
        out_p = out_p[:M, :outf]
    return out_p


# ----------------------------------------------------------------------------- params
def init_random_matrix_params(key, inf, outf, dtype=jnp.float32):
    """Params matching torch.nn.Linear + xavier_uniform_, stored as (inf, outf).

    xavier-uniform's bound sqrt(6/(fan_in+fan_out)) is symmetric in the two
    dims, so sampling directly in (inf, outf) layout is distributionally
    identical to sampling (outf, inf) and transposing (no HBM transpose needed).
    """
    kw, kb = jax.random.split(key)
    a = (6.0 / (inf + outf)) ** 0.5
    w_io = jax.random.uniform(kw, (inf, outf), dtype, minval=-a, maxval=a)
    bb = 1.0 / (inf ** 0.5)  # torch.nn.Linear default bias init U(-1/sqrt(fan_in), ...)
    b = jax.random.uniform(kb, (outf,), dtype, minval=-bb, maxval=bb)
    return w_io, b


def prepare_kernel_params(w_io, b, compute_dtype=jnp.bfloat16):
    """One-time pad + cast of the frozen weight/bias into kernel-ready layout.

    The layer is no-grad / frozen, so this runs once at init and the per-call
    jit never re-reads or re-writes the weight just to pad/cast it.
    """
    # TODO(synk): optional fp8 weight (+ per-tile scale) for v7x's fp8 MXU path.
    inf, outf = w_io.shape
    k_p = _round_up(inf, _LANE)
    n_p = _round_up(outf, _LANE)
    w_p = jnp.pad(w_io, ((0, k_p - inf), (0, n_p - outf))).astype(compute_dtype)
    b_p = jnp.pad(b, (0, n_p - outf)).astype(jnp.float32)[None, :]
    return jax.device_put(w_p), jax.device_put(b_p)


if __name__ == "__main__":
    key = jax.random.PRNGKey(0)
    k_x, k_w = jax.random.split(key)

    batch, inf, outf = 16, 32, 64
    x = jax.random.normal(k_x, (batch, inf), jnp.float32)
    w_io, b = init_random_matrix_params(k_w, inf, outf)
    w_p, b_p = prepare_kernel_params(w_io, b)          # once, at init

    y = jax.block_until_ready(random_matrix_layer(x, w_p, b_p, outf=outf))
    y_ref = x @ w_io + b
    assert y.shape == (batch, outf) and y.dtype == jnp.float32
    # bf16 operands with f32 accumulation: loosened tolerance vs the f32 reference.
    assert jnp.allclose(y, y_ref, atol=3e-2, rtol=3e-2), float(jnp.max(jnp.abs(y - y_ref)))

    # Ragged batch (not divisible by the sublane pack): pad-and-slice path.
    x2 = jax.random.normal(k_x, (10, inf), jnp.float32)
    y2 = jax.block_until_ready(random_matrix_layer(x2, w_p, b_p, outf=outf))
    assert y2.shape == (10, outf)
    assert jnp.allclose(y2, x2 @ w_io + b, atol=3e-2, rtol=3e-2)

    # bf16 output knob (halves writeback bytes; accumulation stays f32).
    y3 = jax.block_until_ready(
        random_matrix_layer(x, w_p, b_p, outf=outf, out_dtype=jnp.bfloat16))
    assert y3.dtype == jnp.bfloat16
    assert jnp.allclose(y3.astype(jnp.float32), y_ref, atol=6e-2, rtol=6e-2)

    # Multi-tile grid + shape-dependent loop order + split-K accumulator path,
    # still at small shapes (forced via the tm/tn/max_k_tile tuning knobs).
    inf4, outf4 = 384, 320
    w4, b4 = init_random_matrix_params(jax.random.PRNGKey(1), inf4, outf4)
    w4_p, b4_p = prepare_kernel_params(w4, b4)
    x4 = jax.random.normal(k_x, (260, inf4), jnp.float32)
    y4 = jax.block_until_ready(
        random_matrix_layer(x4, w4_p, b4_p, outf=outf4, tm=128, tn=128, max_k_tile=128))
    assert y4.shape == (260, outf4)
    assert jnp.allclose(y4, x4 @ w4 + b4, atol=6e-2, rtol=6e-2)

    print("KERNEL_OK")
</pallas_src>

<mosaic_0001>
module attributes {stable_mosaic.version = 11 : i64} {
  func.func @_linear_kernel(%arg0: i32, %arg1: i32, %arg2: i32, %arg3: memref<16x128xbf16, #tpu.memory_space<vmem>>, %arg4: memref<128x128xbf16, #tpu.memory_space<vmem>>, %arg5: memref<1x128xf32, #tpu.memory_space<vmem>>, %arg6: memref<16x128xf32, #tpu.memory_space<vmem>>) attributes {dimension_semantics = [#tpu.dimension_semantics<parallel>, #tpu.dimension_semantics<parallel>, #tpu.dimension_semantics<arbitrary>], iteration_bounds = array<i64: 1, 1, 1>, scalar_prefetch = 0 : i64, scratch_operands = 0 : i64, tpu.core_type = #tpu.core_type<tc>, window_params = [{transform_indices = @transform_0, window_bounds = array<i64: 16, 128>}, {transform_indices = @transform_1, window_bounds = array<i64: 128, 128>}, {transform_indices = @transform_2, window_bounds = array<i64: 1, 128>}, {transform_indices = @transform_3, window_bounds = array<i64: 16, 128>}]} {
    %c0 = arith.constant 0 : index
    %c0_0 = arith.constant 0 : index
    %0 = vector.load %arg3[%c0, %c0_0] : memref<16x128xbf16, #tpu.memory_space<vmem>>, vector<16x128xbf16>
    %c0_1 = arith.constant 0 : index
    %c0_2 = arith.constant 0 : index
    %1 = vector.load %arg4[%c0_1, %c0_2] : memref<128x128xbf16, #tpu.memory_space<vmem>>, vector<128x128xbf16>
    %cst = arith.constant dense<0.000000e+00> : vector<16x128xf32>
    %2 = tpu.matmul %0, %1, %cst {dimension_numbers = #tpu.dot_dimension_numbers<[1], [0], [0], [1], [0, 0, 1, 1], [], []>} : vector<16x128xbf16>, vector<128x128xbf16>, vector<16x128xf32> -> vector<16x128xf32>
    %c0_3 = arith.constant 0 : index
    %c0_4 = arith.constant 0 : index
    %3 = vector.load %arg5[%c0_3, %c0_4] : memref<1x128xf32, #tpu.memory_space<vmem>>, vector<1x128xf32>
    %4 = vector.broadcast %3 : vector<1x128xf32> to vector<16x128xf32>
    %5 = arith.addf %2, %4 : vector<16x128xf32>
    %c0_5 = arith.constant 0 : index
    %c0_6 = arith.constant 0 : index
    %6 = vector.load %arg6[%c0_5, %c0_6] : memref<16x128xf32, #tpu.memory_space<vmem>>, vector<16x128xf32>
    tpu.vector_store %arg6[%c0_5, %c0_6], %5 {strides = array<i32>} : memref<16x128xf32, #tpu.memory_space<vmem>>, vector<16x128xf32>,
    return
  }
  func.func @transform_0(%arg0: i32, %arg1: i32, %arg2: i32) -> (i32, i32) {
    %c0_i32 = arith.constant 0 : i32
    return %arg1, %arg2 : i32, i32
  }
  func.func @transform_1(%arg0: i32, %arg1: i32, %arg2: i32) -> (i32, i32) {
    %c0_i32 = arith.constant 0 : i32
    return %arg2, %arg0 : i32, i32
  }
  func.func @transform_2(%arg0: i32, %arg1: i32, %arg2: i32) -> (i32, i32) {
    %c0_i32 = arith.constant 0 : i32
    %c0_i32_0 = arith.constant 0 : i32
    return %c0_i32, %arg0 : i32, i32
  }
  func.func @transform_3(%arg0: i32, %arg1: i32, %arg2: i32) -> (i32, i32) {
    %c0_i32 = arith.constant 0 : i32
    return %arg1, %arg0 : i32, i32
  }
}

</mosaic_0001>

<llo_original>
// kernel: random_matrix_layer.1
$region0: #{random_matrix_layer.1}
  #allocation0 [shape = 'u32[]', space=smem, size = 0x4, offset = 0x4, fixed_abs, tag = 'smem constant byte address 0x4 - core index']
  #allocation1 [shape = 'u32[144,128]{1,0:T(1,128)}', space=vmem, size = 0x12000, scoped, tag = 'internal scratch']
  %s0 = inlined_call_operand.vmem [shape: bf16[16,128], index: 0, kind: input, shape index: {}]
  %s1 = inlined_call_operand.hbm [shape: bf16[128,128], index: 1, kind: input, shape index: {}]
  %s2 = inlined_call_operand.vmem [shape: f32[1,128], index: 2, kind: input, shape index: {}]
  %s3 = inlined_call_operand.hbm [shape: f32[16,128], index: 3, kind: output, shape index: {}]
  %s4 = sld [smem:[#allocation0]]
  $region26: #{random_matrix_layer.1} parent=0
    _
  %s6 = ssub.s32 1, %s4
  %s7 = scalar_select 0, %s6, %s4
  $region1: #{random_matrix_layer.1} parent=0
    #allocation2 [shape = 'u8[32768]{0}', space=vmem, size = 0x8000, scoped, tag = 'input window, operand 1, single buffered']
    #allocation3 [shape = 's32[1]{0}', space=sflag, size = 0x4, scoped, tag = 'scoped memory for random_matrix_layer.1']
    #allocation4 [shape = 's32[1]{0}', space=sflag, size = 0x4, scoped, tag = 'scoped memory for random_matrix_layer.1']
    #allocation5 [shape = 'u8[8192]{0}', space=vmem, size = 0x2000, scoped, tag = 'output window, operand 0, single buffered']
    %8 = vsyncpa [#allocation3], 0
    %9 = vsyncpa [#allocation4], 0
    // Predicated region
    $region2: #{random_matrix_layer.1} parent=1 // pred_check
      _
    $region3: #{random_matrix_layer.1} parent=1 // pred_check_branch
      %11 = sbr.rel (0) target = $region5
    $region4: #{random_matrix_layer.1} parent=1 // pred_region
      _
    $region5: #{random_matrix_layer.1} parent=1 // pred_fallthru
      _
    // Predicated region
    $region6: #{random_matrix_layer.1} parent=1 // pred_check
      _
    $region7: #{random_matrix_layer.1} parent=1 // pred_check_branch
      %13 = sbr.rel (0) target = $region9
    $region8: #{random_matrix_layer.1} parent=1 // pred_region
      %s15 = ssub.s32 1024, 1024
      %16 = vsyncadd [#allocation3], %s15
      %s17 = sshll.u32 [#allocation2], 4
      %s18 = int_to_ptr.vmem [resolvable:$true] %s17
      %23 = dma.hbm_to_vmem [thread:$0]  %s1, 1024, %s18, [#allocation3], 64, 64, 4
    $region9: #{random_matrix_layer.1} parent=1 // pred_fallthru
      _
    // Predicated region
    $region10: #{random_matrix_layer.1} parent=1 // pred_check
      _
    $region11: #{random_matrix_layer.1} parent=1 // pred_check_branch
      %25 = sbr.rel (0) target = $region13
    $region12: #{random_matrix_layer.1} parent=1 // pred_region
      _
    $region13: #{random_matrix_layer.1} parent=1 // pred_fallthru
      _
    // Predicated region
    $region14: #{random_matrix_layer.1} parent=1 // pred_check
      _
    $region15: #{random_matrix_layer.1} parent=1 // pred_check_branch
      %27 = sbr.rel (0) target = $region17
    $region16: #{random_matrix_layer.1} parent=1 // pred_region
      %28 = dma.done [#allocation3], 1024
    $region17: #{random_matrix_layer.1} parent=1 // pred_fallthru
      _
    %v30 = vld [vmem:[%s0] sm:$0xf]
    %v31 = vld [vmem:[%s0 + $0x4] sm:$0xf]
    %v32 = vld [vmem:[#allocation2] sm:$0xf]
    %v33 = vld [vmem:[#allocation2 + $0x4] sm:$0xf]
    %v34 = vld [vmem:[#allocation2 + $0x8] sm:$0xf]
    %v35 = vld [vmem:[#allocation2 + $0xc] sm:$0xf]
    %v36 = vld [vmem:[#allocation2 + $0x10] sm:$0xf]
    %v37 = vld [vmem:[#allocation2 + $0x14] sm:$0xf]
    %v38 = vld [vmem:[#allocation2 + $0x18] sm:$0xf]
    %v39 = vld [vmem:[#allocation2 + $0x1c] sm:$0xf]
    %v40 = vld [vmem:[#allocation2 + $0x20] sm:$0xf]
    %v41 = vld [vmem:[#allocation2 + $0x24] sm:$0xf]
    %v42 = vld [vmem:[#allocation2 + $0x28] sm:$0xf]
    %v43 = vld [vmem:[#allocation2 + $0x2c] sm:$0xf]
    %v44 = vld [vmem:[#allocation2 + $0x30] sm:$0xf]
    %v45 = vld [vmem:[#allocation2 + $0x34] sm:$0xf]
    %v46 = vld [vmem:[#allocation2 + $0x38] sm:$0xf]
    %v47 = vld [vmem:[#allocation2 + $0x3c] sm:$0xf]
    %v48 = vld [vmem:[%s2] sm:$0x1]
    %v50 = vlaneseq
    %v51 = vshrl.u32 %v50, 7
    %v52 = vsub.s32 0, %v51
    %v53 = vrot.slane %v48, %v52
    %v57 = vunpack.c.l.b16 %v30
    %v58 = vunpack.c.l.b16 %v31
    %v59 = vpack.c.b16 %v58, %v57
    %v77 = vunpack.c.l.b16 %v32
    %v78 = vunpack.c.l.b16 %v33
    %v79 = vunpack.c.l.b16 %v34
    %v80 = vunpack.c.l.b16 %v35
    %v81 = vunpack.c.l.b16 %v36
    %v82 = vunpack.c.l.b16 %v37
    %v83 = vunpack.c.l.b16 %v38
    %v84 = vunpack.c.l.b16 %v39
    %v85 = vunpack.c.l.b16 %v40
    %v86 = vunpack.c.l.b16 %v41
    %v87 = vunpack.c.l.b16 %v42
    %v88 = vunpack.c.l.b16 %v43
    %v89 = vunpack.c.l.b16 %v44
    %v90 = vunpack.c.l.b16 %v45
    %v91 = vunpack.c.l.b16 %v46
    %v92 = vunpack.c.l.b16 %v47
    %v93 = vpack.c.b16 %v78, %v77
    %v94 = vpack.c.b16 %v80, %v79
    %v95 = vpack.c.b16 %v82, %v81
    %v96 = vpack.c.b16 %v84, %v83
    %v97 = vpack.c.b16 %v86, %v85
    %v98 = vpack.c.b16 %v88, %v87
    %v99 = vpack.c.b16 %v90, %v89
    %v100 = vpack.c.b16 %v92, %v91
    %109 = vmatprep.subr.bf16.mxu0 0
    %110 = vmatpush1.bf16.msra.mxu0 %v93
    %111 = vmatprep.subr.bf16.mxu0 0
    %112 = vmatpush1.bf16.msra.mxu0 %v94
    %113 = vmatprep.subr.bf16.mxu0 0
    %114 = vmatpush1.bf16.msra.mxu0 %v95
    %115 = vmatprep.subr.bf16.mxu0 0
    %116 = vmatpush1.bf16.msra.mxu0 %v96
    %117 = vmatprep.subr.bf16.mxu0 0
    %118 = vmatpush1.bf16.msra.mxu0 %v97
    %119 = vmatprep.subr.bf16.mxu0 0
    %120 = vmatpush1.bf16.msra.mxu0 %v98
    %121 = vmatprep.subr.bf16.mxu0 0
    %122 = vmatpush1.bf16.msra.mxu0 %v99
    %123 = vmatprep.subr.bf16.mxu0 0
    %124 = vmatpush1.bf16.msra.mxu0 %v100
    %125 = vmatprep.subr.bf16.mxu0 0
    %126 = vmatpush1.bf16.msra.mxu0 0
    %127 = vmatprep.subr.bf16.mxu0 0
    %128 = vmatpush1.bf16.msra.mxu0 0
    %129 = vmatprep.subr.bf16.mxu0 0
    %130 = vmatpush1.bf16.msra.mxu0 0
    %131 = vmatprep.subr.bf16.mxu0 0
    %132 = vmatpush1.bf16.msra.mxu0 0
    %133 = vmatprep.subr.bf16.mxu0 0
    %134 = vmatpush1.bf16.msra.mxu0 0
    %135 = vmatprep.subr.bf16.mxu0 0
    %136 = vmatpush1.bf16.msra.mxu0 0
    %137 = vmatprep.subr.bf16.mxu0 0
    %138 = vmatpush1.bf16.msra.mxu0 0
    %139 = vmatprep.subr.bf16.mxu0 0
    %140 = vmatpush1.bf16.msra.mxu0 0
    %141 = vmatprep.mubr.bf16.mxu0 0
    %142 = vmatmul.mubr.bf16.gmra.mrb[0].mxu0 %v59
    %v143 = vpop.f32.mrb[0].mxu0
    %v144 = vadd.f32 %v53, %v143
    %v145 = vpop.f32.mrb[0].mxu0
    %v146 = vpop.f32.mrb[0].mxu0
    %v147 = vadd.f32 %v53, %v146
    %v148 = vpop.f32.mrb[0].mxu0
    %149 = vdwg.mxu0
    %150 = vst [vmem:[#allocation5] sm:$0xff] %v144
    %151 = vst [vmem:[#allocation5 + $0x8] sm:$0xff] %v147
    // Predicated region
    $region18: #{random_matrix_layer.1} parent=1 // pred_check
      _
    $region19: #{random_matrix_layer.1} parent=1 // pred_check_branch
      %153 = sbr.rel (0) target = $region21
    $region20: #{random_matrix_layer.1} parent=1 // pred_region
      %s155 = ssub.s32 256, 256
      %156 = vsyncadd [#allocation4], %s155
      %s157 = sshll.u32 [#allocation5], 4
      %s158 = int_to_ptr.vmem [resolvable:$true] %s157
      %163 = dma.vmem_to_hbm [thread:$0]  %s158, 256, %s3, [#allocation4], 128, 128, 8
    $region21: #{random_matrix_layer.1} parent=1 // pred_fallthru
      _
    // Predicated region
    $region22: #{random_matrix_layer.1} parent=1 // pred_check
      _
    $region23: #{random_matrix_layer.1} parent=1 // pred_check_branch
      %165 = sbr.rel (0) target = $region25
    $region24: #{random_matrix_layer.1} parent=1 // pred_region
      %166 = dma.done [#allocation4], 256
    $region25: #{random_matrix_layer.1} parent=1 // pred_fallthru
      _
    %167 = vsyncpa [#allocation3], 1
    %168 = vsyncpa [#allocation4], 1

</llo_original>
